<compile_context>
chip_gen: v7x
topology: tpu7x:2x2x1
jax: 0.10.0
libtpu: 0.0.40
codegen_flags: <defaults>
</compile_context>

<pallas_src>
import functools

import numpy as np
import jax
import jax.numpy as jnp
from jax import lax
from jax.experimental import pallas as pl
from jax.experimental.pallas import tpu as pltpu

EPS = 1e-5          # InstanceNorm2d default eps
NEG_SLOPE = 0.2     # LeakyReLU(0.2)


@functools.lru_cache(maxsize=None)
def _roll_dir():
    """+1 if pltpu.roll follows jnp.roll's shift convention, -1 if reversed.

    Probed once with a trivial kernel so the conv tap shifts stay correct across
    JAX/Mosaic versions; the result is baked in as a static sign at trace time.
    """
    def probe(x_ref, o_ref):
        o_ref[...] = pltpu.roll(x_ref[...], shift=1, axis=1)

    x = jnp.arange(8 * 128, dtype=jnp.float32).reshape(8, 128)
    y = pl.pallas_call(probe, out_shape=jax.ShapeDtypeStruct((8, 128), jnp.float32))(x)
    if bool(jnp.all(y == jnp.roll(x, 1, axis=1))):
        return 1
    if bool(jnp.all(y == jnp.roll(x, -1, axis=1))):
        return -1
    raise RuntimeError("unexpected pltpu.roll semantics")


def _tap_masks(H, W):
    """(9, H*W) f32 validity masks (zero padding) for the 9 conv taps."""
    hw = H * W
    r = np.arange(hw) // W
    c = np.arange(hw) % W
    m = np.zeros((9, hw), np.float32)
    for k in range(9):
        dy, dx = k // 3 - 1, k % 3 - 1
        m[k] = ((r + dy >= 0) & (r + dy < H) & (c + dx >= 0) & (c + dx < W))
    return jnp.asarray(m)


def _pick_bt(B, C, HW, target_bytes=2 << 20):
    """Samples per grid step.

    Constraints / preferences:
      * bt*C (sublane rows of the block) must be a multiple of 8 or cover the
        whole array (Pallas (8,128) block constraint),
      * prefer >= 2 grid steps so v7x's two TensorCores both get work,
      * among those, the largest block <= ~2 MiB (amortize per-step overhead,
        HBM-streaming sweet spot) — double-buffered in+out stays tiny vs VMEM.
    """
    row_bytes = HW * 4
    divisors = [bt for bt in range(1, B + 1) if B % bt == 0]
    feas = [bt for bt in divisors if (bt * C) % 8 == 0 or bt == B]
    multi = [bt for bt in feas if bt < B]          # leaves >= 2 grid steps
    pool = multi if multi else feas
    fitting = [bt for bt in pool if bt * C * row_bytes <= target_bytes]
    return max(fitting) if fitting else min(pool)


def _pick_group_rows(R, C):
    """Rows (whole samples) per block-diagonal MXU dot.

    Capped near 32 rows: big enough to batch several samples per dot and fill
    sublanes, small enough that the kron(I_G, W_k) zero-padding does not push
    the f32 MXU work past the HBM roofline on v5e/v7x.
    """
    cap = max(32, C)
    best = C                                   # always divides R = bt*C
    g = 1
    while True:
        rows = g * C
        if rows > R or rows > cap:
            break
        if R % rows == 0 and (rows % 8 == 0 or rows == R):
            best = rows
        g += 1
    return best


def _block_diag_taps(w, G):
    """torch (Cout, Cin, 3, 3) -> (9, G*Cout, G*Cin): per-tap kron(I_G, W_k)."""
    Cout, Cin = w.shape[0], w.shape[1]
    taps = jnp.transpose(w, (2, 3, 0, 1)).reshape(9, Cout, Cin).astype(jnp.float32)
    eye = jnp.eye(G, dtype=jnp.float32)
    return jnp.einsum("gh,kab->kgahb", eye, taps).reshape(9, G * Cout, G * Cin)


def resblock_kernel(x_ref, m_ref, bd1_ref, bd2_ref, o_ref, *, width, group_rows, roll_dir):
    rows, hw = x_ref.shape
    n_groups = rows // group_rows

    def conv3x3(src, bd_ref):
        # src: (GC, hw) register value. 3x3 conv with zero padding:
        #   9 lane-rolls (XLU slot) + border masks (VPU) + 9 block-diagonal MXU dots
        # accumulated in f32 registers — no im2col scratch, no partial stores.
        # Conv bias is omitted: a per-channel constant is exactly cancelled by the
        # affine-free InstanceNorm that follows.
        acc = jnp.dot(bd_ref[4], src, preferred_element_type=jnp.float32)  # center tap
        for k in range(9):
            if k == 4:
                continue
            dy, dx = k // 3 - 1, k % 3 - 1
            s = dy * width + dx                       # flat-spatial shift of tap k
            t = pltpu.roll(src, shift=(-roll_dir * s) % hw, axis=1)
            t = t * m_ref[k:k + 1, :]                 # zero the wrapped-in border pixels
            acc = acc + jnp.dot(bd_ref[k], t, preferred_element_type=jnp.float32)
        return acc

    def inorm_lrelu(z):
        # InstanceNorm2d (biased variance, eps inside rsqrt, no affine) + LeakyReLU(0.2),
        # per row (= per sample/channel) over the flattened spatial (lane) axis.
        mean = jnp.mean(z, axis=1, keepdims=True)
        var = jnp.mean((z - mean) ** 2, axis=1, keepdims=True)
        zn = (z - mean) * lax.rsqrt(var + EPS)
        return jnp.where(zn >= 0, zn, NEG_SLOPE * zn)

    def process(start):
        xg = x_ref[pl.ds(start, group_rows), :]       # (GC, hw) f32
        y = inorm_lrelu(conv3x3(xg, bd1_ref))         # stays register-resident
        y = inorm_lrelu(conv3x3(y, bd2_ref))
        o_ref[pl.ds(start, group_rows), :] = xg + y   # residual; aligned lane-dense store

    if n_groups <= 8:                                 # small, bounded static unroll
        for g in range(n_groups):
            process(g * group_rows)
    else:                                             # keep code size bounded for big blocks
        def body(g, carry):
            process(pl.multiple_of(g * group_rows, group_rows))
            return carry
        lax.fori_loop(0, n_groups, body, 0)


def resblock_forward(x_nchw, w1, b1, w2, b2):
    """x_nchw: (B, C, H, W) f32. w*: (Cout, Cin, 3, 3) torch layout. b*: (Cout,)."""
    B, C, H, W = x_nchw.shape
    Cout, Cin = w1.shape[0], w1.shape[1]
    assert Cin == C and Cout == C, "residual add requires input_dim == output_dim"
    assert tuple(w1.shape[2:]) == (3, 3) and tuple(w2.shape) == (Cout, Cout, 3, 3)
    del b1, b2  # bias before affine-free InstanceNorm is a mathematical no-op (mean-cancelled)
    HW = H * W

    x_flat = x_nchw.reshape(B * C, HW).astype(jnp.float32)   # free row-major reshape
    masks = _tap_masks(H, W)                                  # (9, HW)

    bt = _pick_bt(B, C, HW)               # samples per grid step
    R = bt * C                            # sublane rows per block
    GC = _pick_group_rows(R, C)           # rows per block-diagonal MXU dot
    G = GC // C                           # samples per dot
    bd1 = _block_diag_taps(w1, G)         # (9, GC, GC)
    bd2 = _block_diag_taps(w2, G)

    grid = (B // bt,)
    block_bytes = R * HW * 4
    const_bytes = 2 * 9 * GC * GC * 4 + 16 * HW * 4
    vmem_limit = int(min(64 << 20, max(8 << 20, 4 * block_bytes + 2 * const_bytes + (2 << 20))))

    out = pl.pallas_call(
        functools.partial(resblock_kernel, width=W, group_rows=GC, roll_dir=_roll_dir()),
        out_shape=jax.ShapeDtypeStruct((B * C, HW), jnp.float32),
        grid_spec=pltpu.PrefetchScalarGridSpec(
            num_scalar_prefetch=0,
            grid=grid,
            in_specs=[
                pl.BlockSpec((R, HW), lambda i: (i, 0)),        # x slab: bt samples/step
                pl.BlockSpec((9, HW), lambda i: (0, 0)),        # tap border masks
                pl.BlockSpec((9, GC, GC), lambda i: (0, 0, 0)), # conv1 block-diag tap weights
                pl.BlockSpec((9, GC, GC), lambda i: (0, 0, 0)), # conv2 block-diag tap weights
            ],
            out_specs=pl.BlockSpec((R, HW), lambda i: (i, 0)),
        ),
        compiler_params=pltpu.CompilerParams(
            dimension_semantics=("parallel",),   # batch blocks independent (2 TCs on v7x)
            vmem_limit_bytes=vmem_limit,
        ),
    )(x_flat, masks, bd1, bd2)
    return out.reshape(B, C, H, W)               # free row-major reshape back to NCHW


def _ref_forward(x_nchw, w1, b1, w2, b2):
    """Pure-JAX reference matching PyTorch semantics (for validation)."""
    def convblock(x, w, b):
        y = jax.lax.conv_general_dilated(
            x, w, window_strides=(1, 1), padding=((1, 1), (1, 1)),
            dimension_numbers=("NCHW", "OIHW", "NCHW"))
        y = y + b[None, :, None, None]
        mean = jnp.mean(y, axis=(2, 3), keepdims=True)
        var = jnp.mean((y - mean) ** 2, axis=(2, 3), keepdims=True)
        yn = (y - mean) / jnp.sqrt(var + EPS)
        return jnp.where(yn >= 0, yn, NEG_SLOPE * yn)

    y = convblock(x_nchw, w1, b1)
    y = convblock(y, w2, b2)
    return x_nchw + y


if __name__ == "__main__":
    B, C, H, W = 2, 4, 16, 16          # input_dim == output_dim == 4 (residual add)
    key = jax.random.PRNGKey(0)
    kx, k1, k2, k3, k4 = jax.random.split(key, 5)
    x = jax.random.normal(kx, (B, C, H, W), jnp.float32)
    w1 = 0.1 * jax.random.normal(k1, (C, C, 3, 3), jnp.float32)
    b1 = 0.1 * jax.random.normal(k2, (C,), jnp.float32)
    w2 = 0.1 * jax.random.normal(k3, (C, C, 3, 3), jnp.float32)
    b2 = 0.1 * jax.random.normal(k4, (C,), jnp.float32)

    out = jax.block_until_ready(resblock_forward(x, w1, b1, w2, b2))
    ref = _ref_forward(x, w1, b1, w2, b2)
    err = float(jnp.max(jnp.abs(out - ref)))
    assert jnp.allclose(out, ref, atol=1e-4, rtol=1e-4), f"max abs err = {err}"
    print("KERNEL_OK")
</pallas_src>

<mosaic_0001>
module attributes {stable_mosaic.version = 11 : i64} {
  func.func @probe(%arg0: memref<8x128xf32, #tpu.memory_space<vmem>>, %arg1: memref<8x128xf32, #tpu.memory_space<vmem>>) attributes {dimension_semantics = [], scalar_prefetch = 0 : i64, scratch_operands = 0 : i64, tpu.core_type = #tpu.core_type<tc>} {
    %c0 = arith.constant 0 : index
    %c0_0 = arith.constant 0 : index
    %0 = vector.load %arg0[%c0, %c0_0] : memref<8x128xf32, #tpu.memory_space<vmem>>, vector<8x128xf32>
    %c1_i32 = arith.constant 1 : i32
    %1 = tpu.dynamic_rotate %0 by %c1_i32 dim 1 : vector<8x128xf32>, i32 -> vector<8x128xf32>
    %c0_1 = arith.constant 0 : index
    %c0_2 = arith.constant 0 : index
    %2 = vector.load %arg1[%c0_1, %c0_2] : memref<8x128xf32, #tpu.memory_space<vmem>>, vector<8x128xf32>
    tpu.vector_store %arg1[%c0_1, %c0_2], %1 {strides = array<i32>} : memref<8x128xf32, #tpu.memory_space<vmem>>, vector<8x128xf32>,
    return
  }
}

</mosaic_0001>

<llo_original>
// kernel: tpu_custom_call.1
$region0: #{tpu_custom_call.1}
  #allocation0 [shape = 'u32[]', space=smem, size = 0x4, offset = 0x4, fixed_abs, tag = 'smem constant byte address 0x4 - core index']
  #allocation1 [shape = 'u32[144,128]{1,0:T(1,128)}', space=vmem, size = 0x12000, scoped, tag = 'internal scratch']
  %s0 = inlined_call_operand.hbm [shape: f32[8,128], index: 0, kind: input, shape index: {}]
  %s1 = inlined_call_operand.hbm [shape: f32[8,128], index: 1, kind: output, shape index: {}]
  %s2 = sld [smem:[#allocation0]]
  $region18: #{tpu_custom_call.1} parent=0
    _
  %s4 = ssub.s32 1, %s2
  %s5 = scalar_select 0, %s4, %s2
  $region1: #{tpu_custom_call.1} parent=0
    #allocation2 [shape = 'u8[4096]{0}', space=vmem, size = 0x1000, scoped, tag = 'input window, operand 0, single buffered']
    #allocation3 [shape = 's32[1]{0}', space=sflag, size = 0x4, scoped, tag = 'scoped memory for tpu_custom_call.1']
    #allocation4 [shape = 's32[1]{0}', space=sflag, size = 0x4, scoped, tag = 'scoped memory for tpu_custom_call.1']
    #allocation5 [shape = 'u8[4096]{0}', space=vmem, size = 0x1000, scoped, tag = 'output window, operand 0, single buffered']
    %6 = vsyncpa [#allocation3], 0
    %7 = vsyncpa [#allocation4], 0
    // Predicated region
    $region2: #{tpu_custom_call.1} parent=1 // pred_check
      _
    $region3: #{tpu_custom_call.1} parent=1 // pred_check_branch
      %9 = sbr.rel (0) target = $region5
    $region4: #{tpu_custom_call.1} parent=1 // pred_region
      %s11 = ssub.s32 128, 128
      %12 = vsyncadd [#allocation3], %s11
      %s14 = sshll.u32 [#allocation2], 4
      %s15 = int_to_ptr.vmem [resolvable:$true] %s14
      %17 = dma.hbm_to_vmem [thread:$0]  %s0, 128, %s15, [#allocation3]
    $region5: #{tpu_custom_call.1} parent=1 // pred_fallthru
      _
    // Predicated region
    $region6: #{tpu_custom_call.1} parent=1 // pred_check
      _
    $region7: #{tpu_custom_call.1} parent=1 // pred_check_branch
      %19 = sbr.rel (0) target = $region9
    $region8: #{tpu_custom_call.1} parent=1 // pred_region
      %20 = dma.done [#allocation3], 128
    $region9: #{tpu_custom_call.1} parent=1 // pred_fallthru
      _
    %v21 = vld [vmem:[#allocation2] sm:$0xff]
    %22 = vrot.lane.b32.xlu0 %v21, 1
    %v23 = vpop.permute.xlu0 %22
    %24 = vst [vmem:[#allocation5] sm:$0xff] %v23
    // Predicated region
    $region10: #{tpu_custom_call.1} parent=1 // pred_check
      _
    $region11: #{tpu_custom_call.1} parent=1 // pred_check_branch
      %26 = sbr.rel (0) target = $region13
    $region12: #{tpu_custom_call.1} parent=1 // pred_region
      %s28 = ssub.s32 128, 128
      %29 = vsyncadd [#allocation4], %s28
      %s31 = sshll.u32 [#allocation5], 4
      %s32 = int_to_ptr.vmem [resolvable:$true] %s31
      %34 = dma.vmem_to_hbm [thread:$0]  %s32, 128, %s1, [#allocation4]
    $region13: #{tpu_custom_call.1} parent=1 // pred_fallthru
      _
    // Predicated region
    $region14: #{tpu_custom_call.1} parent=1 // pred_check
      _
    $region15: #{tpu_custom_call.1} parent=1 // pred_check_branch
      %36 = sbr.rel (0) target = $region17
    $region16: #{tpu_custom_call.1} parent=1 // pred_region
      %37 = dma.done [#allocation4], 128
    $region17: #{tpu_custom_call.1} parent=1 // pred_fallthru
      _
    %38 = vsyncpa [#allocation3], 1
    %39 = vsyncpa [#allocation4], 1

</llo_original>
